<compile_context>
chip_gen: v7x
topology: tpu7x:2x2x1
jax: 0.10.0
libtpu: 0.0.40
codegen_flags: <defaults>
</compile_context>

<pallas_src>
import jax
import jax.numpy as jnp
import numpy as np
from jax import lax
from jax.experimental import pallas as pl
from jax.experimental.pallas import tpu as pltpu

EMBED = 128      # self.embedding_size
NODES = 40       # self.nodes
NODES_P = 128    # NODES zero-padded to a full lane width (exact MXU tile)
OUT = 1
MAX_TILE = 8192  # max batch-lanes per grid step (x tile: 4 MiB f32 / 2 MiB bf16)


def _round_up(n, m):
    return ((n + m - 1) // m) * m


def _num_tensorcores():
    """TensorCores a single Mosaic kernel can shard a 'parallel' grid axis over.
    Perf heuristic only; correctness does not depend on it."""
    try:
        kind = (jax.devices()[0].device_kind or "").lower()
    except Exception:
        return 1
    if "v7" in kind or "v5p" in kind:
        return 2
    return 1


def head_kernel(x_ref, w1_ref, c_ref, b2_ref, oT_ref):
    # x_ref : (tb, EMBED)      natural layout, batch on sublanes (no wrapper transpose)
    # w1_ref: (NODES_P, EMBED) fc weight, PyTorch (out, in) layout, zero-padded rows
    # c_ref : (NODES_P, 2)     column 0 = fc bias, column 1 = output weight (zero-padded)
    # b2_ref: SMEM (1,)        output bias scalar
    # oT_ref: (1, tb)          lane-dense output row
    # h = W1 @ x^T, contracting on EMBED -> (NODES_P, tb); MXU, f32 accumulate.
    h = lax.dot_general(
        w1_ref[...], x_ref[...],
        dimension_numbers=(((1,), (1,)), ((), ())),
        preferred_element_type=jnp.float32)
    c = c_ref[...]
    h = jnp.maximum(h + c[:, 0:1], 0.0)                       # bias + relu (VPU)
    # dropout3 (p=0.2) is identity in eval mode.
    # Output Linear(40->1): VPU broadcast-multiply + sublane reduce -> lane-dense row.
    o = jnp.sum(h * c[:, 1:2], axis=0, keepdims=True) + b2_ref[0]
    oT_ref[...] = o.astype(oT_ref.dtype)


def cnn_linear_head(x, w_fc, b_fc, w_out, b_out):
    """x: [B, 128] (f32 or bf16, used as-is); w_fc: [128, 40]; b_fc: [40];
    w_out: [40, 1]; b_out: [1].  Returns [B, 1] f32."""
    B, E = x.shape
    assert E == EMBED
    f32 = jnp.float32
    cdt = x.dtype  # compute dtype for the MXU operands (bf16 recommended upstream)

    # Tile/grid policy: derive the tile from the step count so padding stays small.
    n_cores = _num_tensorcores()
    b_lane = _round_up(B, 128)
    n_steps = max(n_cores, pl.cdiv(b_lane, MAX_TILE))
    n_steps = min(n_steps, b_lane // 128)          # never split below 128 lanes/step
    tb = _round_up(pl.cdiv(b_lane, n_steps), 128)
    b_pad = n_steps * tb

    x_p = x if b_pad == B else jnp.pad(x, ((0, b_pad - B), (0, 0)))

    # Constants (tiny; built once on host side).  NODES padded 40 -> 128 with zeros.
    w1 = jnp.zeros((NODES_P, EMBED), cdt).at[:NODES, :].set(w_fc.T.astype(cdt))
    c = (jnp.zeros((NODES_P, 2), f32)
         .at[:NODES, 0].set(b_fc.astype(f32))          # fc bias column
         .at[:NODES, 1].set(w_out[:, 0].astype(f32)))  # output weight column
    b2 = b_out.reshape((1,)).astype(f32)               # SMEM scalar

    oT = pl.pallas_call(
        head_kernel,
        out_shape=jax.ShapeDtypeStruct((1, b_pad), f32),
        grid_spec=pltpu.PrefetchScalarGridSpec(
            num_scalar_prefetch=0,
            grid=(n_steps,),
            in_specs=[
                pl.BlockSpec((tb, EMBED), lambda i: (i, 0)),          # x tile (natural layout)
                pl.BlockSpec((NODES_P, EMBED), lambda i: (0, 0)),     # fc weight (fetched once)
                pl.BlockSpec((NODES_P, 2), lambda i: (0, 0)),         # fc bias | output weight
                pl.BlockSpec(memory_space=pltpu.MemorySpace.SMEM),    # output bias scalar
            ],
            out_specs=pl.BlockSpec((1, tb), lambda i: (0, i)),        # lane-dense output row
        ),
        compiler_params=pltpu.CompilerParams(
            dimension_semantics=("parallel",)),
    )(x_p, w1, c, b2)

    return oT[0, :B].reshape(B, OUT)


def _torch_like_linear_init(key, fan_in, fan_out):
    # matches nn.Linear default: U(-1/sqrt(fan_in), 1/sqrt(fan_in))
    kw, kb = jax.random.split(key)
    bound = 1.0 / np.sqrt(fan_in)
    w = jax.random.uniform(kw, (fan_in, fan_out), jnp.float32, -bound, bound)
    b = jax.random.uniform(kb, (fan_out,), jnp.float32, -bound, bound)
    return w, b


def reference(x, w_fc, b_fc, w_out, b_out):
    h = jnp.maximum(x.astype(jnp.float32) @ w_fc + b_fc, 0.0)
    return h @ w_out + b_out


if __name__ == "__main__":
    key = jax.random.PRNGKey(0)
    kx, k1, k2, kx2 = jax.random.split(key, 4)

    w_fc, b_fc = _torch_like_linear_init(k1, EMBED, NODES)    # self.fc
    w_out, b_out = _torch_like_linear_init(k2, NODES, OUT)    # self.output

    # Case 1: tiny f32 batch (single grid step, padded to 128 lanes) -- tight tolerance.
    B = 8
    x = jax.random.normal(kx, (B, EMBED), jnp.float32)        # stand-in for ESM2 CLS reps
    o = jax.block_until_ready(cnn_linear_head(x, w_fc, b_fc, w_out, b_out))
    ref = reference(x, w_fc, b_fc, w_out, b_out)
    np.testing.assert_allclose(np.asarray(o), np.asarray(ref), rtol=1e-5, atol=1e-5)
    assert o.shape == (B, OUT)

    # Case 2: larger ragged bf16 batch (multi-step grid possible, batch padding,
    # bf16 MXU operands with f32 accumulation) -- looser tolerance for bf16 rounding.
    B2 = 300
    x2 = jax.random.normal(kx2, (B2, EMBED), jnp.float32).astype(jnp.bfloat16)
    o2 = jax.block_until_ready(cnn_linear_head(x2, w_fc, b_fc, w_out, b_out))
    ref2 = reference(x2.astype(jnp.float32),
                     w_fc.astype(jnp.bfloat16).astype(jnp.float32),
                     b_fc, w_out, b_out)
    np.testing.assert_allclose(np.asarray(o2), np.asarray(ref2), rtol=2e-2, atol=2e-2)
    assert o2.shape == (B2, OUT)

    print("KERNEL_OK")
</pallas_src>

<mosaic_0001>
module attributes {stable_mosaic.version = 11 : i64} {
  func.func @head_kernel(%arg0: i32, %arg1: memref<128x128xf32, #tpu.memory_space<vmem>>, %arg2: memref<128x128xf32, #tpu.memory_space<vmem>>, %arg3: memref<128x2xf32, #tpu.memory_space<vmem>>, %arg4: memref<1xf32, #tpu.memory_space<smem>>, %arg5: memref<1x128xf32, #tpu.memory_space<vmem>>) attributes {dimension_semantics = [#tpu.dimension_semantics<parallel>], iteration_bounds = array<i64: 1>, scalar_prefetch = 0 : i64, scratch_operands = 0 : i64, tpu.core_type = #tpu.core_type<tc>, window_params = [{transform_indices = @transform_0, window_bounds = array<i64: 128, 128>}, {pipeline_mode = #tpu.pipeline_mode<synchronous>, transform_indices = @transform_1, window_bounds = array<i64: 128, 128>}, {pipeline_mode = #tpu.pipeline_mode<synchronous>, transform_indices = @transform_2, window_bounds = array<i64: 128, 2>}, {transform_indices = @transform_3, window_bounds = array<i64: 1>}, {transform_indices = @transform_4, window_bounds = array<i64: 1, 128>}]} {
    %c0 = arith.constant 0 : index
    %c0_0 = arith.constant 0 : index
    %0 = vector.load %arg2[%c0, %c0_0] : memref<128x128xf32, #tpu.memory_space<vmem>>, vector<128x128xf32>
    %c0_1 = arith.constant 0 : index
    %c0_2 = arith.constant 0 : index
    %1 = vector.load %arg1[%c0_1, %c0_2] : memref<128x128xf32, #tpu.memory_space<vmem>>, vector<128x128xf32>
    %cst = arith.constant dense<0.000000e+00> : vector<128x128xf32>
    %2 = tpu.matmul %0, %1, %cst {dimension_numbers = #tpu.dot_dimension_numbers<[1], [1], [0], [0], [0, 0, 1, 0], [], []>} : vector<128x128xf32>, vector<128x128xf32>, vector<128x128xf32> -> vector<128x128xf32>
    %c0_3 = arith.constant 0 : index
    %c0_4 = arith.constant 0 : index
    %3 = vector.load %arg3[%c0_3, %c0_4] : memref<128x2xf32, #tpu.memory_space<vmem>>, vector<128x2xf32>
    %4 = vector.extract_strided_slice %3 {offsets = [0, 0], sizes = [128, 1], strides = [1, 1]} : vector<128x2xf32> to vector<128x1xf32>
    %5 = vector.broadcast %4 : vector<128x1xf32> to vector<128x128xf32>
    %6 = arith.addf %2, %5 : vector<128x128xf32>
    %cst_5 = arith.constant 0.000000e+00 : f32
    %7 = vector.broadcast %cst_5 : f32 to vector<128x128xf32>
    %8 = arith.maximumf %6, %7 : vector<128x128xf32>
    %9 = vector.extract_strided_slice %3 {offsets = [0, 1], sizes = [128, 1], strides = [1, 1]} : vector<128x2xf32> to vector<128x1xf32>
    %10 = vector.broadcast %9 : vector<128x1xf32> to vector<128x128xf32>
    %11 = arith.mulf %8, %10 : vector<128x128xf32>
    %cst_6 = arith.constant dense<0.000000e+00> : vector<128xf32>
    %12 = vector.multi_reduction <add>, %11, %cst_6 [0] : vector<128x128xf32> to vector<128xf32>
    %13 = vector.shape_cast %12 : vector<128xf32> to vector<1x128xf32>
    %c0_7 = arith.constant 0 : index
    %14 = memref.load %arg4[%c0_7] : memref<1xf32, #tpu.memory_space<smem>>
    %15 = vector.broadcast %14 : f32 to vector<1x128xf32>
    %16 = arith.addf %13, %15 : vector<1x128xf32>
    %c0_8 = arith.constant 0 : index
    %c0_9 = arith.constant 0 : index
    %17 = vector.load %arg5[%c0_8, %c0_9] : memref<1x128xf32, #tpu.memory_space<vmem>>, vector<1x128xf32>
    tpu.vector_store %arg5[%c0_8, %c0_9], %16 {strides = array<i32>} : memref<1x128xf32, #tpu.memory_space<vmem>>, vector<1x128xf32>,
    return
  }
  func.func @transform_0(%arg0: i32) -> (i32, i32) {
    %c0_i32 = arith.constant 0 : i32
    %c0_i32_0 = arith.constant 0 : i32
    return %arg0, %c0_i32 : i32, i32
  }
  func.func @transform_1(%arg0: i32) -> (i32, i32) {
    %c0_i32 = arith.constant 0 : i32
    %c0_i32_0 = arith.constant 0 : i32
    %c0_i32_1 = arith.constant 0 : i32
    return %c0_i32, %c0_i32_0 : i32, i32
  }
  func.func @transform_2(%arg0: i32) -> (i32, i32) {
    %c0_i32 = arith.constant 0 : i32
    %c0_i32_0 = arith.constant 0 : i32
    %c0_i32_1 = arith.constant 0 : i32
    return %c0_i32, %c0_i32_0 : i32, i32
  }
  func.func @transform_3(%arg0: i32) -> i32 {
    %c0_i32 = arith.constant 0 : i32
    %c0_i32_0 = arith.constant 0 : i32
    return %c0_i32 : i32
  }
  func.func @transform_4(%arg0: i32) -> (i32, i32) {
    %c0_i32 = arith.constant 0 : i32
    %c0_i32_0 = arith.constant 0 : i32
    return %c0_i32, %arg0 : i32, i32
  }
}

</mosaic_0001>

<llo_original>
// kernel: tpu_custom_call.1
$region0: #{tpu_custom_call.1}
  #allocation0 [shape = 'u32[]', space=smem, size = 0x4, offset = 0x4, fixed_abs, tag = 'smem constant byte address 0x4 - core index']
  #allocation1 [shape = 'u32[144,128]{1,0:T(1,128)}', space=vmem, size = 0x12000, scoped, tag = 'internal scratch']
  #allocation2 [shape = 'f32[1]{0:T(128)S(6)}', space=smem, size = 0x200, scoped, tag = 'scoped memory for tpu_custom_call.1']
  %s0 = inlined_call_operand.vmem [shape: f32[128,128], index: 0, kind: input, shape index: {}]
  %s1 = inlined_call_operand.hbm [shape: f32[128,128], index: 1, kind: input, shape index: {}]
  %s2 = inlined_call_operand.vmem [shape: f32[128,2], index: 2, kind: input, shape index: {}]
  %s3 = inlined_call_operand.<no memory space> [shape: f32[1], index: 3, kind: input, shape index: {}]
  %s4 = inlined_call_operand.hbm [shape: f32[1,128], index: 4, kind: output, shape index: {}]
  %s5 = sld [smem:[#allocation0]]
  $region30: #{tpu_custom_call.1} parent=0
    _
  %s7 = ssub.s32 1, %s5
  %s8 = scalar_select 0, %s7, %s5
  %9 = sst [smem:[#allocation2]] %s3
  $region1: #{tpu_custom_call.1} parent=0
    #allocation3 [shape = 'u8[65536]{0}', space=vmem, size = 0x10000, scoped, tag = 'input window, operand 1, single buffered']
    #allocation4 [shape = 's32[1]{0}', space=sflag, size = 0x4, scoped, tag = 'scoped memory for tpu_custom_call.1']
    #allocation5 [shape = 's32[1]{0}', space=sflag, size = 0x4, scoped, tag = 'scoped memory for tpu_custom_call.1']
    #allocation6 [shape = 'u8[512]{0}', space=vmem, size = 0x400, scoped, tag = 'output window, operand 0, single buffered']
    %10 = vsyncpa [#allocation4], 0
    %11 = vsyncpa [#allocation5], 0
    // Predicated region
    $region2: #{tpu_custom_call.1} parent=1 // pred_check
      _
    $region3: #{tpu_custom_call.1} parent=1 // pred_check_branch
      %13 = sbr.rel (0) target = $region5
    $region4: #{tpu_custom_call.1} parent=1 // pred_region
      _
    $region5: #{tpu_custom_call.1} parent=1 // pred_fallthru
      _
    // Predicated region
    $region6: #{tpu_custom_call.1} parent=1 // pred_check
      _
    $region7: #{tpu_custom_call.1} parent=1 // pred_check_branch
      %15 = sbr.rel (0) target = $region9
    $region8: #{tpu_custom_call.1} parent=1 // pred_region
      %s17 = ssub.s32 2048, 2048
      %18 = vsyncadd [#allocation4], %s17
      %s19 = sshll.u32 [#allocation3], 4
      %s20 = int_to_ptr.vmem [resolvable:$true] %s19
      %25 = dma.hbm_to_vmem [thread:$0]  %s1, 2048, %s20, [#allocation4], 128, 128, 8
    $region9: #{tpu_custom_call.1} parent=1 // pred_fallthru
      _
    // Predicated region
    $region10: #{tpu_custom_call.1} parent=1 // pred_check
      _
    $region11: #{tpu_custom_call.1} parent=1 // pred_check_branch
      %27 = sbr.rel (0) target = $region13
    $region12: #{tpu_custom_call.1} parent=1 // pred_region
      _
    $region13: #{tpu_custom_call.1} parent=1 // pred_fallthru
      _
    // Predicated region
    $region14: #{tpu_custom_call.1} parent=1 // pred_check
      _
    $region15: #{tpu_custom_call.1} parent=1 // pred_check_branch
      %29 = sbr.rel (0) target = $region17
    $region16: #{tpu_custom_call.1} parent=1 // pred_region
      _
    $region17: #{tpu_custom_call.1} parent=1 // pred_fallthru
      _
    // Predicated region
    $region18: #{tpu_custom_call.1} parent=1 // pred_check
      _
    $region19: #{tpu_custom_call.1} parent=1 // pred_check_branch
      %31 = sbr.rel (0) target = $region21
    $region20: #{tpu_custom_call.1} parent=1 // pred_region
      %32 = dma.done [#allocation4], 2048
    $region21: #{tpu_custom_call.1} parent=1 // pred_fallthru
      _
    %v33 = vld [vmem:[#allocation3] sm:$0xff]
    %v34 = vld [vmem:[#allocation3 + $0x8] sm:$0xff]
    %v35 = vld [vmem:[#allocation3 + $0x10] sm:$0xff]
    %v36 = vld [vmem:[#allocation3 + $0x18] sm:$0xff]
    %v37 = vld [vmem:[#allocation3 + $0x20] sm:$0xff]
    %v38 = vld [vmem:[#allocation3 + $0x28] sm:$0xff]
    %v39 = vld [vmem:[#allocation3 + $0x30] sm:$0xff]
    %v40 = vld [vmem:[#allocation3 + $0x38] sm:$0xff]
    %v41 = vld [vmem:[#allocation3 + $0x40] sm:$0xff]
    %v42 = vld [vmem:[#allocation3 + $0x48] sm:$0xff]
    %v43 = vld [vmem:[#allocation3 + $0x50] sm:$0xff]
    %v44 = vld [vmem:[#allocation3 + $0x58] sm:$0xff]
    %v45 = vld [vmem:[#allocation3 + $0x60] sm:$0xff]
    %v46 = vld [vmem:[#allocation3 + $0x68] sm:$0xff]
    %v47 = vld [vmem:[#allocation3 + $0x70] sm:$0xff]
    %v48 = vld [vmem:[#allocation3 + $0x78] sm:$0xff]
    %v49 = vld [vmem:[%s0] sm:$0xff]
    %v50 = vld [vmem:[%s0 + $0x8] sm:$0xff]
    %v51 = vld [vmem:[%s0 + $0x10] sm:$0xff]
    %v52 = vld [vmem:[%s0 + $0x18] sm:$0xff]
    %v53 = vld [vmem:[%s0 + $0x20] sm:$0xff]
    %v54 = vld [vmem:[%s0 + $0x28] sm:$0xff]
    %v55 = vld [vmem:[%s0 + $0x30] sm:$0xff]
    %v56 = vld [vmem:[%s0 + $0x38] sm:$0xff]
    %v57 = vld [vmem:[%s0 + $0x40] sm:$0xff]
    %v58 = vld [vmem:[%s0 + $0x48] sm:$0xff]
    %v59 = vld [vmem:[%s0 + $0x50] sm:$0xff]
    %v60 = vld [vmem:[%s0 + $0x58] sm:$0xff]
    %v61 = vld [vmem:[%s0 + $0x60] sm:$0xff]
    %v62 = vld [vmem:[%s0 + $0x68] sm:$0xff]
    %v63 = vld [vmem:[%s0 + $0x70] sm:$0xff]
    %v64 = vld [vmem:[%s0 + $0x78] sm:$0xff]
    %v65 = vld [vmem:[%s2] sm:$0xff]
    %v66 = vld [vmem:[%s2 + $0x8] sm:$0xff]
    %v67 = vld [vmem:[%s2 + $0x10] sm:$0xff]
    %v68 = vld [vmem:[%s2 + $0x18] sm:$0xff]
    %v69 = vld [vmem:[%s2 + $0x20] sm:$0xff]
    %v70 = vld [vmem:[%s2 + $0x28] sm:$0xff]
    %v71 = vld [vmem:[%s2 + $0x30] sm:$0xff]
    %v72 = vld [vmem:[%s2 + $0x38] sm:$0xff]
    %v73 = vld [vmem:[%s2 + $0x40] sm:$0xff]
    %v74 = vld [vmem:[%s2 + $0x48] sm:$0xff]
    %v75 = vld [vmem:[%s2 + $0x50] sm:$0xff]
    %v76 = vld [vmem:[%s2 + $0x58] sm:$0xff]
    %v77 = vld [vmem:[%s2 + $0x60] sm:$0xff]
    %v78 = vld [vmem:[%s2 + $0x68] sm:$0xff]
    %v79 = vld [vmem:[%s2 + $0x70] sm:$0xff]
    %v80 = vld [vmem:[%s2 + $0x78] sm:$0xff]
    %82 = vset.pattern.permute.xlu0 0
    %83 = vperm.xlu0 %82, %v65
    %v84 = vpop.permute.xlu0 %83
    %87 = vset.pattern.permute.xlu0 0
    %88 = vperm.xlu0 %87, %v66
    %v89 = vpop.permute.xlu0 %88
    %92 = vset.pattern.permute.xlu0 0
    %93 = vperm.xlu0 %92, %v67
    %v94 = vpop.permute.xlu0 %93
    %97 = vset.pattern.permute.xlu0 0
    %98 = vperm.xlu0 %97, %v68
    %v99 = vpop.permute.xlu0 %98
    %102 = vset.pattern.permute.xlu0 0
    %103 = vperm.xlu0 %102, %v69
    %v104 = vpop.permute.xlu0 %103
    %107 = vset.pattern.permute.xlu0 0
    %108 = vperm.xlu0 %107, %v70
    %v109 = vpop.permute.xlu0 %108
    %112 = vset.pattern.permute.xlu0 0
    %113 = vperm.xlu0 %112, %v71
    %v114 = vpop.permute.xlu0 %113
    %117 = vset.pattern.permute.xlu0 0
    %118 = vperm.xlu0 %117, %v72
    %v119 = vpop.permute.xlu0 %118
    %122 = vset.pattern.permute.xlu0 0
    %123 = vperm.xlu0 %122, %v73
    %v124 = vpop.permute.xlu0 %123
    %127 = vset.pattern.permute.xlu0 0
    %128 = vperm.xlu0 %127, %v74
    %v129 = vpop.permute.xlu0 %128
    %132 = vset.pattern.permute.xlu0 0
    %133 = vperm.xlu0 %132, %v75
    %v134 = vpop.permute.xlu0 %133
    %137 = vset.pattern.permute.xlu0 0
    %138 = vperm.xlu0 %137, %v76
    %v139 = vpop.permute.xlu0 %138
    %142 = vset.pattern.permute.xlu0 0
    %143 = vperm.xlu0 %142, %v77
    %v144 = vpop.permute.xlu0 %143
    %147 = vset.pattern.permute.xlu0 0
    %148 = vperm.xlu0 %147, %v78
    %v149 = vpop.permute.xlu0 %148
    %152 = vset.pattern.permute.xlu0 0
    %153 = vperm.xlu0 %152, %v79
    %v154 = vpop.permute.xlu0 %153
    %157 = vset.pattern.permute.xlu0 0
    %158 = vperm.xlu0 %157, %v80
    %v159 = vpop.permute.xlu0 %158
    %161 = vmatprep.subr.mxu0 0.0
    %162 = vmatpush1.xpose.msra.mxu0 %v49
    %163 = vmatprep.subr.mxu0 0.0
    %164 = vmatpush1.xpose.msra.mxu0 %v50
    %165 = vmatprep.subr.mxu0 0.0
    %166 = vmatpush1.xpose.msra.mxu0 %v51
    %167 = vmatprep.subr.mxu0 0.0
    %168 = vmatpush1.xpose.msra.mxu0 %v52
    %169 = vmatprep.subr.mxu0 0.0
    %170 = vmatpush1.xpose.msra.mxu0 %v53
    %171 = vmatprep.subr.mxu0 0.0
    %172 = vmatpush1.xpose.msra.mxu0 %v54
    %173 = vmatprep.subr.mxu0 0.0
    %174 = vmatpush1.xpose.msra.mxu0 %v55
    %175 = vmatprep.subr.mxu0 0.0
    %176 = vmatpush1.xpose.msra.mxu0 %v56
    %177 = vmatprep.subr.mxu0 0.0
    %178 = vmatpush1.xpose.msra.mxu0 %v57
    %179 = vmatprep.subr.mxu0 0.0
    %180 = vmatpush1.xpose.msra.mxu0 %v58
    %181 = vmatprep.subr.mxu0 0.0
    %182 = vmatpush1.xpose.msra.mxu0 %v59
    %183 = vmatprep.subr.mxu0 0.0
    %184 = vmatpush1.xpose.msra.mxu0 %v60
    %185 = vmatprep.subr.mxu0 0.0
    %186 = vmatpush1.xpose.msra.mxu0 %v61
    %187 = vmatprep.subr.mxu0 0.0
    %188 = vmatpush1.xpose.msra.mxu0 %v62
    %189 = vmatprep.subr.mxu0 0.0
    %190 = vmatpush1.xpose.msra.mxu0 %v63
    %191 = vmatprep.subr.mxu0 0.0
    %192 = vmatpush1.xpose.msra.mxu0 %v64
    %193 = vmatprep.subr.mxu0 0.0
    %194 = vmatpush1.xpose.msra.mxu0 0.0
    %195 = vmatprep.subr.mxu0 0.0
    %196 = vmatpush1.xpose.msra.mxu0 0.0
    %197 = vmatprep.subr.mxu0 0.0
    %198 = vmatpush1.xpose.msra.mxu0 0.0
    %199 = vmatprep.subr.mxu0 0.0
    %200 = vmatpush1.xpose.msra.mxu0 0.0
    %201 = vmatprep.subr.mxu0 0.0
    %202 = vmatpush1.xpose.msra.mxu0 0.0
    %203 = vmatprep.subr.mxu0 0.0
    %204 = vmatpush1.xpose.msra.mxu0 0.0
    %205 = vmatprep.subr.mxu0 0.0
    %206 = vmatpush1.xpose.msra.mxu0 0.0
    %207 = vmatprep.subr.mxu0 0.0
    %208 = vmatpush1.xpose.msra.mxu0 0.0
    %209 = vmatprep.subr.mxu0 0.0
    %210 = vmatpush1.xpose.msra.mxu0 0.0
    %211 = vmatprep.subr.mxu0 0.0
    %212 = vmatpush1.xpose.msra.mxu0 0.0
    %213 = vmatprep.subr.mxu0 0.0
    %214 = vmatpush1.xpose.msra.mxu0 0.0
    %215 = vmatprep.subr.mxu0 0.0
    %216 = vmatpush1.xpose.msra.mxu0 0.0
    %217 = vmatprep.subr.mxu0 0.0
    %218 = vmatpush1.xpose.msra.mxu0 0.0
    %219 = vmatprep.subr.mxu0 0.0
    %220 = vmatpush1.xpose.msra.mxu0 0.0
    %221 = vmatprep.subr.mxu0 0.0
    %222 = vmatpush1.xpose.msra.mxu0 0.0
    %223 = vmatprep.subr.mxu0 0.0
    %224 = vmatpush1.xpose.msra.mxu0 0.0
    %225 = vmatprep.mubr.f32.mxu0 0.0
    %226 = vmatmul.mubr.f32.gmra.mrb[0].mxu0 %v33
    %v227 = vpop.f32.mrb[0].mxu0
    %v228 = vadd.f32 %v84, %v227
    %v229 = vpop.f32.mrb[0].mxu0
    %230 = vmatprep.mubr.f32.mxu0 0.0
    %231 = vmatmul.mubr.f32.gmra.mrb[0].mxu0 %v34
    %v232 = vpop.f32.mrb[0].mxu0
    %v233 = vadd.f32 %v89, %v232
    %v234 = vpop.f32.mrb[0].mxu0
    %235 = vmatprep.mubr.f32.mxu0 0.0
    %236 = vmatmul.mubr.f32.gmra.mrb[0].mxu0 %v35
    %v237 = vpop.f32.mrb[0].mxu0
    %v238 = vadd.f32 %v94, %v237
    %v239 = vpop.f32.mrb[0].mxu0
    %240 = vmatprep.mubr.f32.mxu0 0.0
    %241 = vmatmul.mubr.f32.gmra.mrb[0].mxu0 %v36
    %v242 = vpop.f32.mrb[0].mxu0
    %v243 = vadd.f32 %v99, %v242
    %v244 = vpop.f32.mrb[0].mxu0
    %245 = vmatprep.mubr.f32.mxu0 0.0
    %246 = vmatmul.mubr.f32.gmra.mrb[0].mxu0 %v37
    %v247 = vpop.f32.mrb[0].mxu0
    %v248 = vadd.f32 %v104, %v247
    %v249 = vpop.f32.mrb[0].mxu0
    %250 = vmatprep.mubr.f32.mxu0 0.0
    %251 = vmatmul.mubr.f32.gmra.mrb[0].mxu0 %v38
    %v252 = vpop.f32.mrb[0].mxu0
    %v253 = vadd.f32 %v109, %v252
    %v254 = vpop.f32.mrb[0].mxu0
    %255 = vmatprep.mubr.f32.mxu0 0.0
    %256 = vmatmul.mubr.f32.gmra.mrb[0].mxu0 %v39
    %v257 = vpop.f32.mrb[0].mxu0
    %v258 = vadd.f32 %v114, %v257
    %v259 = vpop.f32.mrb[0].mxu0
    %260 = vmatprep.mubr.f32.mxu0 0.0
    %261 = vmatmul.mubr.f32.gmra.mrb[0].mxu0 %v40
    %v262 = vpop.f32.mrb[0].mxu0
    %v263 = vadd.f32 %v119, %v262
    %v264 = vpop.f32.mrb[0].mxu0
    %265 = vmatprep.mubr.f32.mxu0 0.0
    %266 = vmatmul.mubr.f32.gmra.mrb[0].mxu0 %v41
    %v267 = vpop.f32.mrb[0].mxu0
    %v268 = vadd.f32 %v124, %v267
    %v269 = vpop.f32.mrb[0].mxu0
    %270 = vmatprep.mubr.f32.mxu0 0.0
    %271 = vmatmul.mubr.f32.gmra.mrb[0].mxu0 %v42
    %v272 = vpop.f32.mrb[0].mxu0
    %v273 = vadd.f32 %v129, %v272
    %v274 = vpop.f32.mrb[0].mxu0
    %275 = vmatprep.mubr.f32.mxu0 0.0
    %276 = vmatmul.mubr.f32.gmra.mrb[0].mxu0 %v43
    %v277 = vpop.f32.mrb[0].mxu0
    %v278 = vadd.f32 %v134, %v277
    %v279 = vpop.f32.mrb[0].mxu0
    %280 = vmatprep.mubr.f32.mxu0 0.0
    %281 = vmatmul.mubr.f32.gmra.mrb[0].mxu0 %v44
    %v282 = vpop.f32.mrb[0].mxu0
    %v283 = vadd.f32 %v139, %v282
    %v284 = vpop.f32.mrb[0].mxu0
    %285 = vmatprep.mubr.f32.mxu0 0.0
    %286 = vmatmul.mubr.f32.gmra.mrb[0].mxu0 %v45
    %v287 = vpop.f32.mrb[0].mxu0
    %v288 = vadd.f32 %v144, %v287
    %v289 = vpop.f32.mrb[0].mxu0
    %290 = vmatprep.mubr.f32.mxu0 0.0
    %291 = vmatmul.mubr.f32.gmra.mrb[0].mxu0 %v46
    %v292 = vpop.f32.mrb[0].mxu0
    %v293 = vadd.f32 %v149, %v292
    %v294 = vpop.f32.mrb[0].mxu0
    %295 = vmatprep.mubr.f32.mxu0 0.0
    %296 = vmatmul.mubr.f32.gmra.mrb[0].mxu0 %v47
    %v297 = vpop.f32.mrb[0].mxu0
    %v298 = vadd.f32 %v154, %v297
    %v299 = vpop.f32.mrb[0].mxu0
    %300 = vmatprep.mubr.f32.mxu0 0.0
    %301 = vmatmul.mubr.f32.gmra.mrb[0].mxu0 %v48
    %v302 = vpop.f32.mrb[0].mxu0
    %v303 = vadd.f32 %v159, %v302
    %v304 = vpop.f32.mrb[0].mxu0
    %305 = vdwg.mxu0
    %v306 = vmax.f32 %v228, 0.0
    %v307 = vmax.f32 %v233, 0.0
    %v308 = vmax.f32 %v238, 0.0
    %v309 = vmax.f32 %v243, 0.0
    %v310 = vmax.f32 %v248, 0.0
    %v311 = vmax.f32 %v253, 0.0
    %v312 = vmax.f32 %v258, 0.0
    %v313 = vmax.f32 %v263, 0.0
    %v314 = vmax.f32 %v268, 0.0
    %v315 = vmax.f32 %v273, 0.0
    %v316 = vmax.f32 %v278, 0.0
    %v317 = vmax.f32 %v283, 0.0
    %v318 = vmax.f32 %v288, 0.0
    %v319 = vmax.f32 %v293, 0.0
    %v320 = vmax.f32 %v298, 0.0
    %v321 = vmax.f32 %v303, 0.0
    %322 = vset.pattern.permute.xlu0 1
    %323 = vperm.xlu0 %322, %v65
    %v324 = vpop.permute.xlu0 %323
    %326 = vset.pattern.permute.xlu0 1
    %327 = vperm.xlu0 %326, %v66
    %v328 = vpop.permute.xlu0 %327
    %330 = vset.pattern.permute.xlu0 1
    %331 = vperm.xlu0 %330, %v67
    %v332 = vpop.permute.xlu0 %331
    %334 = vset.pattern.permute.xlu0 1
    %335 = vperm.xlu0 %334, %v68
    %v336 = vpop.permute.xlu0 %335
    %338 = vset.pattern.permute.xlu0 1
    %339 = vperm.xlu0 %338, %v69
    %v340 = vpop.permute.xlu0 %339
    %342 = vset.pattern.permute.xlu0 1
    %343 = vperm.xlu0 %342, %v70
    %v344 = vpop.permute.xlu0 %343
    %346 = vset.pattern.permute.xlu0 1
    %347 = vperm.xlu0 %346, %v71
    %v348 = vpop.permute.xlu0 %347
    %350 = vset.pattern.permute.xlu0 1
    %351 = vperm.xlu0 %350, %v72
    %v352 = vpop.permute.xlu0 %351
    %354 = vset.pattern.permute.xlu0 1
    %355 = vperm.xlu0 %354, %v73
    %v356 = vpop.permute.xlu0 %355
    %358 = vset.pattern.permute.xlu0 1
    %359 = vperm.xlu0 %358, %v74
    %v360 = vpop.permute.xlu0 %359
    %362 = vset.pattern.permute.xlu0 1
    %363 = vperm.xlu0 %362, %v75
    %v364 = vpop.permute.xlu0 %363
    %366 = vset.pattern.permute.xlu0 1
    %367 = vperm.xlu0 %366, %v76
    %v368 = vpop.permute.xlu0 %367
    %370 = vset.pattern.permute.xlu0 1
    %371 = vperm.xlu0 %370, %v77
    %v372 = vpop.permute.xlu0 %371
    %374 = vset.pattern.permute.xlu0 1
    %375 = vperm.xlu0 %374, %v78
    %v376 = vpop.permute.xlu0 %375
    %378 = vset.pattern.permute.xlu0 1
    %379 = vperm.xlu0 %378, %v79
    %v380 = vpop.permute.xlu0 %379
    %382 = vset.pattern.permute.xlu0 1
    %383 = vperm.xlu0 %382, %v80
    %v384 = vpop.permute.xlu0 %383
    %v386 = vmul.f32 %v306, %v324
    %v387 = vmul.f32 %v307, %v328
    %v388 = vmul.f32 %v308, %v332
    %v389 = vmul.f32 %v309, %v336
    %v390 = vmul.f32 %v310, %v340
    %v391 = vmul.f32 %v311, %v344
    %v392 = vmul.f32 %v312, %v348
    %v393 = vmul.f32 %v313, %v352
    %v394 = vmul.f32 %v314, %v356
    %v395 = vmul.f32 %v315, %v360
    %v396 = vmul.f32 %v316, %v364
    %v397 = vmul.f32 %v317, %v368
    %v398 = vmul.f32 %v318, %v372
    %v399 = vmul.f32 %v319, %v376
    %v400 = vmul.f32 %v320, %v380
    %v401 = vmul.f32 %v321, %v384
    %v402 = vadd.f32 %v386, %v387
    %v403 = vadd.f32 %v402, %v388
    %v404 = vadd.f32 %v403, %v389
    %v405 = vadd.f32 %v404, %v390
    %v406 = vadd.f32 %v405, %v391
    %v407 = vadd.f32 %v406, %v392
    %v408 = vadd.f32 %v407, %v393
    %v409 = vadd.f32 %v408, %v394
    %v410 = vadd.f32 %v409, %v395
    %v411 = vadd.f32 %v410, %v396
    %v412 = vadd.f32 %v411, %v397
    %v413 = vadd.f32 %v412, %v398
    %v414 = vadd.f32 %v413, %v399
    %v415 = vadd.f32 %v414, %v400
    %v416 = vadd.f32 %v415, %v401
    %v417 = vrot.slane %v416, 4
    %v418 = vadd.f32 %v416, %v417
    %v419 = vrot.slane %v418, 2
    %v420 = vadd.f32 %v418, %v419
    %v421 = vrot.slane %v420, 1
    %v422 = vadd.f32 %v420, %v421
    %s423 = sld [smem:[#allocation2]]
    %v424 = vstv %s423
    %v425 = vadd.f32 %v422, %v424
    %426 = vst [vmem:[#allocation6] sm:$0x1] %v425
    // Predicated region
    $region22: #{tpu_custom_call.1} parent=1 // pred_check
      _
    $region23: #{tpu_custom_call.1} parent=1 // pred_check_branch
      %428 = sbr.rel (0) target = $region25
    $region24: #{tpu_custom_call.1} parent=1 // pred_region
      %s430 = ssub.s32 16, 16
      %431 = vsyncadd [#allocation5], %s430
      %s433 = sshll.u32 [#allocation6], 4
      %s434 = int_to_ptr.vmem [resolvable:$true] %s433
      %436 = dma.vmem_to_hbm [thread:$0]  %s434, 16, %s4, [#allocation5]
    $region25: #{tpu_custom_call.1} parent=1 // pred_fallthru
      _
    // Predicated region
    $region26: #{tpu_custom_call.1} parent=1 // pred_check
      _
    $region27: #{tpu_custom_call.1} parent=1 // pred_check_branch
      %438 = sbr.rel (0) target = $region29
    $region28: #{tpu_custom_call.1} parent=1 // pred_region
      %439 = dma.done [#allocation5], 16
    $region29: #{tpu_custom_call.1} parent=1 // pred_fallthru
      _
    %440 = vsyncpa [#allocation4], 1
    %441 = vsyncpa [#allocation5], 1

</llo_original>
